<compile_context>
chip_gen: v7x
topology: tpu7x:2x2x1
jax: 0.10.0
libtpu: 0.0.40
codegen_flags: <defaults>
</compile_context>

<pallas_src>
import functools
import math

import jax
import jax.numpy as jnp
from jax import lax
from jax.experimental import pallas as pl
from jax.experimental.pallas import tpu as pltpu


def _round_up(x, m):
    return ((x + m - 1) // m) * m


def _vmem_limit(block_bytes):
    # 2x for double-buffering + margin; clamp to a safe scoped range.
    need = 2 * int(block_bytes) + (4 << 20)
    return int(min(max(need, 16 << 20), 48 << 20))


def kv_proj_kernel(xk_ref, xv_ref, wk_ref, wv_ref, k_out_ref, v_out_ref):
    """One grid step per head: project full K / V for that head.

    Runs ONCE (not once per query tile) and emits a head-major layout so the
    attention kernel can take full-width per-head blocks without lane slicing.
    """
    k = jnp.dot(xk_ref[...], wk_ref[0], preferred_element_type=jnp.float32)
    v = jnp.dot(xv_ref[...], wv_ref[0], preferred_element_type=jnp.float32)
    k_out_ref[0] = k.astype(k_out_ref.dtype)
    v_out_ref[0] = v.astype(v_out_ref.dtype)


def attn_kernel(xq_ref, k_ref, v_ref, wq_ref, wo_ref, o_ref, acc_ref, *,
                approx_recip):
    """Grid = (q_tiles, heads); heads innermost, reduced into the output.

    Each step: project q for this (tile, head), attend against this head's
    (S, D) K/V block, and fold the result into the f32 output accumulator
    through this head's (D, D) slice of the output projection.
    """
    h = pl.program_id(1)

    @pl.when(h == 0)
    def _():
        acc_ref[...] = jnp.zeros_like(acc_ref)

    # Q projection for this (tile, head); 1/sqrt(d_model) already folded into Wq.
    q = jnp.dot(xq_ref[...], wq_ref[0],
                preferred_element_type=jnp.float32)                 # (TQ, D) f32

    # Scores q @ k.T (contract head dim), bf16 MXU operands, f32 accumulate.
    s = lax.dot_general(q.astype(k_ref.dtype), k_ref[0],
                        dimension_numbers=(((1,), (1,)), ((), ())),
                        preferred_element_type=jnp.float32)          # (TQ, S)

    # Softmax over keys in f32, with deferred normalization.
    m = jnp.max(s, axis=1, keepdims=True)
    e = jnp.exp(s - m)
    denom = jnp.sum(e, axis=1, keepdims=True)                        # (TQ, 1)

    o_h = jnp.dot(e.astype(v_ref.dtype), v_ref[0],
                  preferred_element_type=jnp.float32)                # (TQ, D)
    inv = pl.reciprocal(denom, approx=approx_recip)                  # EUP path
    o_h = o_h * inv

    # Fold this head straight into the output accumulator via its Wo slice
    # (no (TQ, H*D) concat scratch, no masked lane stores).
    acc_ref[...] += jnp.dot(o_h.astype(wo_ref.dtype), wo_ref[0],
                            preferred_element_type=jnp.float32)

    @pl.when(h == pl.num_programs(1) - 1)
    def _():
        o_ref[...] = acc_ref[...].astype(o_ref.dtype)


def multi_head_attention(enc_q, enc_k, enc_v, wq, wk, wv, wo, *,
                         num_heads, d_model,
                         compute_dtype=jnp.bfloat16, approx_recip=True):
    """wq/wk/wv: (H, D, D) nn.Linear weights (out x in); wo: (D, H*D).

    mask=None path only. compute_dtype=jnp.float32 + approx_recip=False gives
    the exact-f32 path used by the tight tolerance test.
    """
    S = enc_q.shape[0]
    H, D = num_heads, d_model
    itemsize = jnp.dtype(compute_dtype).itemsize

    # ---- one-time wrapper-side weight prep --------------------------------
    scale = 1.0 / math.sqrt(float(D))
    wq_t = (jnp.transpose(wq, (0, 2, 1)) * scale).astype(compute_dtype)  # (H,D,D)
    wk_t = jnp.transpose(wk, (0, 2, 1)).astype(compute_dtype)            # (H,D,D)
    wv_t = jnp.transpose(wv, (0, 2, 1)).astype(compute_dtype)            # (H,D,D)
    wo_h = wo.T.reshape(H, D, D).astype(compute_dtype)                   # (H,D,D)

    x_k = enc_k.astype(compute_dtype)
    x_v = enc_v.astype(compute_dtype)

    # ---- phase 1: one-shot head-major K/V projection (hoisted out of grid) --
    proj_block_bytes = (2 * S * D + 2 * D * D + 2 * S * D) * itemsize
    k_heads, v_heads = pl.pallas_call(
        kv_proj_kernel,
        out_shape=(jax.ShapeDtypeStruct((H, S, D), compute_dtype),
                   jax.ShapeDtypeStruct((H, S, D), compute_dtype)),
        grid_spec=pltpu.PrefetchScalarGridSpec(
            num_scalar_prefetch=0,
            grid=(H,),
            in_specs=[
                pl.BlockSpec((S, D), lambda h: (0, 0)),        # x_k (resident)
                pl.BlockSpec((S, D), lambda h: (0, 0)),        # x_v (resident)
                pl.BlockSpec((1, D, D), lambda h: (h, 0, 0)),  # Wk^T[h]
                pl.BlockSpec((1, D, D), lambda h: (h, 0, 0)),  # Wv^T[h]
            ],
            out_specs=[
                pl.BlockSpec((1, S, D), lambda h: (h, 0, 0)),
                pl.BlockSpec((1, S, D), lambda h: (h, 0, 0)),
            ],
        ),
        compiler_params=pltpu.CompilerParams(
            dimension_semantics=("parallel",),
            vmem_limit_bytes=_vmem_limit(proj_block_bytes),
        ),
    )(x_k, x_v, wk_t, wv_t)

    # ---- query padding / tiling --------------------------------------------
    # Pad queries (only) to sublane-aligned tiles; the key axis stays at full S
    # so the softmax denominator is unaffected. Padded rows are sliced off below.
    TQ = min(256, _round_up(S, 8))
    Sq_pad = _round_up(S, TQ)
    x_q = enc_q
    if Sq_pad != S:
        x_q = jnp.pad(x_q, ((0, Sq_pad - S), (0, 0)))
    x_q = x_q.astype(compute_dtype)

    # ---- phase 2: attention + output projection ----------------------------
    attn_block_bytes = (TQ * D * itemsize            # q tile
                        + 2 * S * D * itemsize        # K[h], V[h]
                        + 2 * D * D * itemsize        # Wq[h], Wo[h]
                        + 2 * TQ * D * 4)             # f32 acc + output block
    kernel = functools.partial(attn_kernel, approx_recip=approx_recip)
    out = pl.pallas_call(
        kernel,
        out_shape=jax.ShapeDtypeStruct((Sq_pad, D), jnp.float32),
        grid_spec=pltpu.PrefetchScalarGridSpec(
            num_scalar_prefetch=0,
            grid=(Sq_pad // TQ, H),
            in_specs=[
                pl.BlockSpec((TQ, D), lambda i, h: (i, 0)),       # q tile
                pl.BlockSpec((1, S, D), lambda i, h: (h, 0, 0)),  # K[h]
                pl.BlockSpec((1, S, D), lambda i, h: (h, 0, 0)),  # V[h]
                pl.BlockSpec((1, D, D), lambda i, h: (h, 0, 0)),  # Wq^T[h] (scaled)
                pl.BlockSpec((1, D, D), lambda i, h: (h, 0, 0)),  # Wo[h]
            ],
            out_specs=pl.BlockSpec((TQ, D), lambda i, h: (i, 0)),
            scratch_shapes=[pltpu.VMEM((TQ, D), jnp.float32)],    # output acc
        ),
        compiler_params=pltpu.CompilerParams(
            dimension_semantics=("parallel", "arbitrary"),
            vmem_limit_bytes=_vmem_limit(attn_block_bytes),
        ),
    )(x_q, k_heads, v_heads, wq_t, wo_h)

    return out[:S]


def _reference(enc_q, enc_k, enc_v, wq, wk, wv, wo, *, num_heads, d_model):
    outs = []
    for h in range(num_heads):
        q = enc_q @ wq[h].T
        k = enc_k @ wk[h].T
        v = enc_v @ wv[h].T
        s = (q @ k.T) / math.sqrt(d_model)
        p = jax.nn.softmax(s, axis=1)
        outs.append(p @ v)
    cat = jnp.concatenate(outs, axis=1)
    return cat @ wo.T


if __name__ == "__main__":
    d_model = 2
    num_heads = 2
    S = 3

    # Inputs from the module definition.
    enc = jnp.array([[1.16, 0.23],
                     [0.57, 1.36],
                     [4.41, -2.16]], dtype=jnp.float32)
    enc_q = enc
    enc_k = enc
    enc_v = enc

    # Deterministic parameter init (PyTorch nn.Linear-style uniform bounds).
    key = jax.random.PRNGKey(0)
    kq, kk, kv, ko = jax.random.split(key, 4)
    bound = 1.0 / math.sqrt(d_model)
    wq = jax.random.uniform(kq, (num_heads, d_model, d_model),
                            minval=-bound, maxval=bound, dtype=jnp.float32)
    wk = jax.random.uniform(kk, (num_heads, d_model, d_model),
                            minval=-bound, maxval=bound, dtype=jnp.float32)
    wv = jax.random.uniform(kv, (num_heads, d_model, d_model),
                            minval=-bound, maxval=bound, dtype=jnp.float32)
    bound_o = 1.0 / math.sqrt(d_model * num_heads)
    wo = jax.random.uniform(ko, (d_model, d_model * num_heads),
                            minval=-bound_o, maxval=bound_o, dtype=jnp.float32)

    ref = _reference(enc_q, enc_k, enc_v, wq, wk, wv, wo,
                     num_heads=num_heads, d_model=d_model)

    # 1) Exact-f32 path: tight tolerance against the f32 reference.
    out_f32 = multi_head_attention(enc_q, enc_k, enc_v, wq, wk, wv, wo,
                                   num_heads=num_heads, d_model=d_model,
                                   compute_dtype=jnp.float32,
                                   approx_recip=False)
    out_f32 = jax.block_until_ready(out_f32)
    assert out_f32.shape == (S, d_model)
    assert jnp.allclose(out_f32, ref, atol=1e-4, rtol=1e-4), (out_f32, ref)

    # 2) Production path (bf16 MXU operands + approx reciprocal): loosened
    #    tolerance -- the delta is dominated by bf16 operand rounding.
    out_bf16 = multi_head_attention(enc_q, enc_k, enc_v, wq, wk, wv, wo,
                                    num_heads=num_heads, d_model=d_model)
    out_bf16 = jax.block_until_ready(out_bf16)
    assert out_bf16.shape == (S, d_model)
    assert jnp.allclose(out_bf16, ref, atol=1e-1, rtol=5e-2), (out_bf16, ref)

    print("KERNEL_OK")
</pallas_src>

<mosaic_0001>
module attributes {stable_mosaic.version = 11 : i64} {
  func.func @kv_proj_kernel(%arg0: i32, %arg1: memref<3x2xf32, #tpu.memory_space<vmem>>, %arg2: memref<3x2xf32, #tpu.memory_space<vmem>>, %arg3: memref<1x2x2xf32, #tpu.memory_space<vmem>>, %arg4: memref<1x2x2xf32, #tpu.memory_space<vmem>>, %arg5: memref<1x3x2xf32, #tpu.memory_space<vmem>>, %arg6: memref<1x3x2xf32, #tpu.memory_space<vmem>>) attributes {dimension_semantics = [#tpu.dimension_semantics<parallel>], iteration_bounds = array<i64: 2>, scalar_prefetch = 0 : i64, scratch_operands = 0 : i64, tpu.core_type = #tpu.core_type<tc>, window_params = [{pipeline_mode = #tpu.pipeline_mode<synchronous>, transform_indices = @transform_0, window_bounds = array<i64: 3, 2>}, {pipeline_mode = #tpu.pipeline_mode<synchronous>, transform_indices = @transform_1, window_bounds = array<i64: 3, 2>}, {transform_indices = @transform_2, window_bounds = array<i64: 1, 2, 2>}, {transform_indices = @transform_3, window_bounds = array<i64: 1, 2, 2>}, {transform_indices = @transform_4, window_bounds = array<i64: 1, 3, 2>}, {transform_indices = @transform_5, window_bounds = array<i64: 1, 3, 2>}]} {
    %c0 = arith.constant 0 : index
    %c0_0 = arith.constant 0 : index
    %0 = vector.load %arg1[%c0, %c0_0] : memref<3x2xf32, #tpu.memory_space<vmem>>, vector<3x2xf32>
    %c0_1 = arith.constant 0 : index
    %c0_2 = arith.constant 0 : index
    %c0_3 = arith.constant 0 : index
    %1 = vector.load %arg3[%c0_1, %c0_2, %c0_3] : memref<1x2x2xf32, #tpu.memory_space<vmem>>, vector<1x2x2xf32>
    %2 = vector.shape_cast %1 : vector<1x2x2xf32> to vector<2x2xf32>
    %cst = arith.constant dense<0.000000e+00> : vector<3x2xf32>
    %3 = tpu.matmul %0, %2, %cst {dimension_numbers = #tpu.dot_dimension_numbers<[1], [0], [0], [1], [0, 0, 1, 1], [], []>} : vector<3x2xf32>, vector<2x2xf32>, vector<3x2xf32> -> vector<3x2xf32>
    %c0_4 = arith.constant 0 : index
    %c0_5 = arith.constant 0 : index
    %4 = vector.load %arg2[%c0_4, %c0_5] : memref<3x2xf32, #tpu.memory_space<vmem>>, vector<3x2xf32>
    %c0_6 = arith.constant 0 : index
    %c0_7 = arith.constant 0 : index
    %c0_8 = arith.constant 0 : index
    %5 = vector.load %arg4[%c0_6, %c0_7, %c0_8] : memref<1x2x2xf32, #tpu.memory_space<vmem>>, vector<1x2x2xf32>
    %6 = vector.shape_cast %5 : vector<1x2x2xf32> to vector<2x2xf32>
    %cst_9 = arith.constant dense<0.000000e+00> : vector<3x2xf32>
    %7 = tpu.matmul %4, %6, %cst_9 {dimension_numbers = #tpu.dot_dimension_numbers<[1], [0], [0], [1], [0, 0, 1, 1], [], []>} : vector<3x2xf32>, vector<2x2xf32>, vector<3x2xf32> -> vector<3x2xf32>
    %c0_10 = arith.constant 0 : index
    %c0_11 = arith.constant 0 : index
    %c0_12 = arith.constant 0 : index
    %8 = vector.load %arg5[%c0_10, %c0_11, %c0_12] : memref<1x3x2xf32, #tpu.memory_space<vmem>>, vector<1x3x2xf32>
    %9 = vector.shape_cast %8 : vector<1x3x2xf32> to vector<3x2xf32>
    %10 = vector.shape_cast %3 : vector<3x2xf32> to vector<1x3x2xf32>
    tpu.vector_store %arg5[%c0_10, %c0_11, %c0_12], %10 {strides = array<i32>} : memref<1x3x2xf32, #tpu.memory_space<vmem>>, vector<1x3x2xf32>,
    %c0_13 = arith.constant 0 : index
    %c0_14 = arith.constant 0 : index
    %c0_15 = arith.constant 0 : index
    %11 = vector.load %arg6[%c0_13, %c0_14, %c0_15] : memref<1x3x2xf32, #tpu.memory_space<vmem>>, vector<1x3x2xf32>
    %12 = vector.shape_cast %11 : vector<1x3x2xf32> to vector<3x2xf32>
    %13 = vector.shape_cast %7 : vector<3x2xf32> to vector<1x3x2xf32>
    tpu.vector_store %arg6[%c0_13, %c0_14, %c0_15], %13 {strides = array<i32>} : memref<1x3x2xf32, #tpu.memory_space<vmem>>, vector<1x3x2xf32>,
    return
  }
  func.func @transform_0(%arg0: i32) -> (i32, i32) {
    %c0_i32 = arith.constant 0 : i32
    %c0_i32_0 = arith.constant 0 : i32
    %c0_i32_1 = arith.constant 0 : i32
    return %c0_i32, %c0_i32_0 : i32, i32
  }
  func.func @transform_1(%arg0: i32) -> (i32, i32) {
    %c0_i32 = arith.constant 0 : i32
    %c0_i32_0 = arith.constant 0 : i32
    %c0_i32_1 = arith.constant 0 : i32
    return %c0_i32, %c0_i32_0 : i32, i32
  }
  func.func @transform_2(%arg0: i32) -> (i32, i32, i32) {
    %c0_i32 = arith.constant 0 : i32
    %c0_i32_0 = arith.constant 0 : i32
    %c0_i32_1 = arith.constant 0 : i32
    return %arg0, %c0_i32, %c0_i32_0 : i32, i32, i32
  }
  func.func @transform_3(%arg0: i32) -> (i32, i32, i32) {
    %c0_i32 = arith.constant 0 : i32
    %c0_i32_0 = arith.constant 0 : i32
    %c0_i32_1 = arith.constant 0 : i32
    return %arg0, %c0_i32, %c0_i32_0 : i32, i32, i32
  }
  func.func @transform_4(%arg0: i32) -> (i32, i32, i32) {
    %c0_i32 = arith.constant 0 : i32
    %c0_i32_0 = arith.constant 0 : i32
    %c0_i32_1 = arith.constant 0 : i32
    return %arg0, %c0_i32, %c0_i32_0 : i32, i32, i32
  }
  func.func @transform_5(%arg0: i32) -> (i32, i32, i32) {
    %c0_i32 = arith.constant 0 : i32
    %c0_i32_0 = arith.constant 0 : i32
    %c0_i32_1 = arith.constant 0 : i32
    return %arg0, %c0_i32, %c0_i32_0 : i32, i32, i32
  }
}

</mosaic_0001>

<llo_original>
// kernel: tpu_custom_call.1
$region0: #{tpu_custom_call.1}
  #allocation0 [shape = 'u32[]', space=smem, size = 0x4, offset = 0x4, fixed_abs, tag = 'smem constant byte address 0x4 - core index']
  #allocation1 [shape = 'u32[144,128]{1,0:T(1,128)}', space=vmem, size = 0x12000, scoped, tag = 'internal scratch']
  %s0 = inlined_call_operand.vmem [shape: f32[3,2], index: 0, kind: input, shape index: {}]
  %s1 = inlined_call_operand.vmem [shape: f32[3,2], index: 1, kind: input, shape index: {}]
  %s2 = inlined_call_operand.vmem [shape: f32[2,2,2], index: 2, kind: input, shape index: {}]
  %s3 = inlined_call_operand.vmem [shape: f32[2,2,2], index: 3, kind: input, shape index: {}]
  %s4 = inlined_call_operand.vmem [shape: f32[2,3,2], index: 4, kind: output, shape index: {0}]
  %s5 = inlined_call_operand.vmem [shape: f32[2,3,2], index: 5, kind: output, shape index: {1}]
  %6 = xla_tuple %s4, %s5
  %s7 = sld [smem:[#allocation0]]
  $region57: #{tpu_custom_call.1} parent=0
    _
  %s9 = ssub.s32 1, %s7
  %s10 = scalar_select 0, %s9, %s7
  loop: start=0, step=1, limit=4
  $region2: #{tpu_custom_call.1} parent=0 // loop_pre_header
    _
  $region3: #{tpu_custom_call.1} parent=0 // loop_header
    %s12 = sphi 0, %s16
    %p13 = scmp.ge.s32.totalorder %s12, 4
    %s20 = sphi 0, %s20
    %s22 = sphi 0, %s20
    %s23 = sphi 0, %s22
    %s37 = sphi 0, %s23
    %s41 = sphi 0, %s41
    %s43 = sphi 0, %s41
    %s44 = sphi 0, %s43
    %s58 = sphi 0, %s44
    %s64 = sphi 0, %s66
    %s67 = sphi 0, %s64
    %s68 = sphi 0, %s67
    %s84 = sphi 0, %s68
    %s90 = sphi 0, %s92
    %s93 = sphi 0, %s90
    %s94 = sphi 0, %s93
    %s110 = sphi 0, %s94
    %s116 = sphi 0, %s118
    %s119 = sphi 0, %s116
    %s120 = sphi 0, %s119
    %s136 = sphi 0, %s120
    %s142 = sphi 0, %s144
    %s145 = sphi 0, %s142
    %s146 = sphi 0, %s145
    %s162 = sphi 0, %s146
  $region4: #{tpu_custom_call.1} parent=0 // loop_header_branch
    %15 = sbr.rel (%p13) target = $region8
  $region5: #{tpu_custom_call.1} parent=0 // loop_body
    %s17 = ssub.s32 %s12, 1
    %s18 = ssub.s32 %s12, 2
    %s19 = sadd.s32 %s12, 1
    %s21 = sadd.s32 %s20, 1
    %p24 = scmp.eq.s32.totalorder %s12, 1
    %p25 = scmp.ne.s32.totalorder %s20, %s22
    %p26 = scmp.eq.s32.totalorder %s12, 0
    %p27 = por %p25, %p26
    %p28 = scmp.ne.s32.totalorder %s20, %s22
    %p29 = scmp.eq.s32.totalorder %s17, 1
    %p30 = por %p28, %p29
    %p31 = scmp.ne.s32.totalorder %s22, %s23
    %p32 = scmp.eq.s32.totalorder %s17, 0
    %p33 = por %p31, %p32
    %p34 = scmp.ne.s32.totalorder %s22, %s23
    %p35 = scmp.eq.s32.totalorder %s18, 1
    %p36 = por %p34, %p35
    %p38 = scmp.ne.s32.totalorder %s23, %s37
    %p39 = scmp.eq.s32.totalorder %s18, 0
    %p40 = por %p38, %p39
    %s42 = sadd.s32 %s41, 1
    %p45 = scmp.eq.s32.totalorder %s12, 1
    %p46 = scmp.ne.s32.totalorder %s41, %s43
    %p47 = scmp.eq.s32.totalorder %s12, 0
    %p48 = por %p46, %p47
    %p49 = scmp.ne.s32.totalorder %s41, %s43
    %p50 = scmp.eq.s32.totalorder %s17, 1
    %p51 = por %p49, %p50
    %p52 = scmp.ne.s32.totalorder %s43, %s44
    %p53 = scmp.eq.s32.totalorder %s17, 0
    %p54 = por %p52, %p53
    %p55 = scmp.ne.s32.totalorder %s43, %s44
    %p56 = scmp.eq.s32.totalorder %s18, 1
    %p57 = por %p55, %p56
    %p59 = scmp.ne.s32.totalorder %s44, %s58
    %p60 = scmp.eq.s32.totalorder %s18, 0
    %p61 = por %p59, %p60
    %s62 = ssub.s32 %s12, %s19
    %p63 = scmp.eq.s32.totalorder %s62, 0
    %s65 = sadd.s32 %s64, 1
    %s66 = scalar_select %p63, %s64, %s65
    %p69 = pneg %p63
    %p70 = scmp.eq.s32.totalorder %s12, 1
    %p71 = por %p69, %p70
    %p72 = scmp.ne.s32.totalorder %s64, %s67
    %p73 = scmp.eq.s32.totalorder %s12, 0
    %p74 = por %p72, %p73
    %p75 = scmp.ne.s32.totalorder %s64, %s67
    %p76 = scmp.eq.s32.totalorder %s17, 1
    %p77 = por %p75, %p76
    %p78 = scmp.ne.s32.totalorder %s67, %s68
    %p79 = scmp.eq.s32.totalorder %s17, 0
    %p80 = por %p78, %p79
    %p81 = scmp.ne.s32.totalorder %s67, %s68
    %p82 = scmp.eq.s32.totalorder %s18, 1
    %p83 = por %p81, %p82
    %p85 = scmp.ne.s32.totalorder %s68, %s84
    %p86 = scmp.eq.s32.totalorder %s18, 0
    %p87 = por %p85, %p86
    %s88 = ssub.s32 %s12, %s19
    %p89 = scmp.eq.s32.totalorder %s88, 0
    %s91 = sadd.s32 %s90, 1
    %s92 = scalar_select %p89, %s90, %s91
    %p95 = pneg %p89
    %p96 = scmp.eq.s32.totalorder %s12, 1
    %p97 = por %p95, %p96
    %p98 = scmp.ne.s32.totalorder %s90, %s93
    %p99 = scmp.eq.s32.totalorder %s12, 0
    %p100 = por %p98, %p99
    %p101 = scmp.ne.s32.totalorder %s90, %s93
    %p102 = scmp.eq.s32.totalorder %s17, 1
    %p103 = por %p101, %p102
    %p104 = scmp.ne.s32.totalorder %s93, %s94
    %p105 = scmp.eq.s32.totalorder %s17, 0
    %p106 = por %p104, %p105
    %p107 = scmp.ne.s32.totalorder %s93, %s94
    %p108 = scmp.eq.s32.totalorder %s18, 1
    %p109 = por %p107, %p108
    %p111 = scmp.ne.s32.totalorder %s94, %s110
    %p112 = scmp.eq.s32.totalorder %s18, 0
    %p113 = por %p111, %p112
    %s114 = ssub.s32 %s12, %s19
    %p115 = scmp.eq.s32.totalorder %s114, 0
    %s117 = sadd.s32 %s116, 1
    %s118 = scalar_select %p115, %s116, %s117
    %p121 = pneg %p115
    %p122 = scmp.eq.s32.totalorder %s12, 1
    %p123 = por %p121, %p122
    %p124 = scmp.ne.s32.totalorder %s116, %s119
    %p125 = scmp.eq.s32.totalorder %s12, 0
    %p126 = por %p124, %p125
    %p127 = scmp.ne.s32.totalorder %s116, %s119
    %p128 = scmp.eq.s32.totalorder %s17, 1
    %p129 = por %p127, %p128
    %p130 = scmp.ne.s32.totalorder %s119, %s120
    %p131 = scmp.eq.s32.totalorder %s17, 0
    %p132 = por %p130, %p131
    %p133 = scmp.ne.s32.totalorder %s119, %s120
    %p134 = scmp.eq.s32.totalorder %s18, 1
    %p135 = por %p133, %p134
    %p137 = scmp.ne.s32.totalorder %s120, %s136
    %p138 = scmp.eq.s32.totalorder %s18, 0
    %p139 = por %p137, %p138
    %s140 = ssub.s32 %s12, %s19
    %p141 = scmp.eq.s32.totalorder %s140, 0
    %s143 = sadd.s32 %s142, 1
    %s144 = scalar_select %p141, %s142, %s143
    %p147 = pneg %p141
    %p148 = scmp.eq.s32.totalorder %s12, 1
    %p149 = por %p147, %p148
    %p150 = scmp.ne.s32.totalorder %s142, %s145
    %p151 = scmp.eq.s32.totalorder %s12, 0
    %p152 = por %p150, %p151
    %p153 = scmp.ne.s32.totalorder %s142, %s145
    %p154 = scmp.eq.s32.totalorder %s17, 1
    %p155 = por %p153, %p154
    %p156 = scmp.ne.s32.totalorder %s145, %s146
    %p157 = scmp.eq.s32.totalorder %s17, 0
    %p158 = por %p156, %p157
    %p159 = scmp.ne.s32.totalorder %s145, %s146
    %p160 = scmp.eq.s32.totalorder %s18, 1
    %p161 = por %p159, %p160
    %p163 = scmp.ne.s32.totalorder %s146, %s162
    %p164 = scmp.eq.s32.totalorder %s18, 0
    %p165 = por %p163, %p164
    %p166 = scmp.le.s32.totalorder 1, %s12
    %p167 = scmp.lt.s32.totalorder %s12, 3
    %p168 = pnand %p166, %p167
    %p169 = pneg %p168
    // Predicated region
    $region9: #{tpu_custom_call.1} parent=5 // pred_check
      _
    $region10: #{tpu_custom_call.1} parent=5 // pred_check_branch
      %171 = sbr.rel (%p168) target = $region12
    $region11: #{tpu_custom_call.1} parent=5 // pred_region
      %s172 = ssub.s32 %s12, 1
      // Predicated region
      $region13: #{tpu_custom_call.1} parent=11 // pred_check
        %p173 = pneg %p33
      $region14: #{tpu_custom_call.1} parent=11 // pred_check_branch
        %175 = sbr.rel (%p173) target = $region16
      $region15: #{tpu_custom_call.1} parent=11 // pred_region
        _
      $region16: #{tpu_custom_call.1} parent=11 // pred_fallthru
        _
      // Predicated region
      $region17: #{tpu_custom_call.1} parent=11 // pred_check
        %p176 = pneg %p54
      $region18: #{tpu_custom_call.1} parent=11 // pred_check_branch
        %178 = sbr.rel (%p176) target = $region20
      $region19: #{tpu_custom_call.1} parent=11 // pred_region
        _
      $region20: #{tpu_custom_call.1} parent=11 // pred_fallthru
        _
    $region12: #{tpu_custom_call.1} parent=5 // pred_fallthru
      _
    %p179 = scmp.lt.s32.totalorder %s12, 2
    // Predicated region
    $region21: #{tpu_custom_call.1} parent=5 // pred_check
      %p180 = pneg %p179
    $region22: #{tpu_custom_call.1} parent=5 // pred_check_branch
      %182 = sbr.rel (%p180) target = $region24
    $region23: #{tpu_custom_call.1} parent=5 // pred_region
      // Predicated region
      $region25: #{tpu_custom_call.1} parent=23 // pred_check
        %p183 = pneg %p74
      $region26: #{tpu_custom_call.1} parent=23 // pred_check_branch
        %185 = sbr.rel (%p183) target = $region28
      $region27: #{tpu_custom_call.1} parent=23 // pred_region
        %p186 = scmp.lt.s32.totalorder %s12, 1
        %s187 = scalar_select %p186, %s12, 1
        %s188 = smul.addr %s187, 2
        %s189 = scalar_lea.vmem %s2, %s188
      $region28: #{tpu_custom_call.1} parent=23 // pred_fallthru
        _
      // Predicated region
      $region29: #{tpu_custom_call.1} parent=23 // pred_check
        %p190 = pneg %p100
      $region30: #{tpu_custom_call.1} parent=23 // pred_check_branch
        %192 = sbr.rel (%p190) target = $region32
      $region31: #{tpu_custom_call.1} parent=23 // pred_region
        %p193 = scmp.lt.s32.totalorder %s12, 1
        %s194 = scalar_select %p193, %s12, 1
        %s195 = smul.addr %s194, 2
        %s196 = scalar_lea.vmem %s3, %s195
      $region32: #{tpu_custom_call.1} parent=23 // pred_fallthru
        _
    $region24: #{tpu_custom_call.1} parent=5 // pred_fallthru
      _
    %p197 = scmp.le.s32.totalorder 1, %s12
    %p198 = scmp.lt.s32.totalorder %s12, 3
    %p199 = pnand %p197, %p198
    %p200 = pneg %p199
    // Predicated region
    $region33: #{tpu_custom_call.1} parent=5 // pred_check
      _
    $region34: #{tpu_custom_call.1} parent=5 // pred_check_branch
      %202 = sbr.rel (%p199) target = $region36
    $region35: #{tpu_custom_call.1} parent=5 // pred_region
      %s203 = ssub.s32 %s12, 1
      %p204 = pneg %p33
      %p205 = pneg %p30
      %p206 = pneg %p54
      %p207 = pneg %p51
      %p208 = scmp.lt.s32.totalorder %s17, 1
      %s209 = scalar_select %p208, %s17, 1
      %s210 = smul.addr %s209, 2
      %s211 = scalar_lea.vmem %s2, %s210
      %p212 = pneg %p80
      %p213 = pneg %p77
      %p214 = scmp.lt.s32.totalorder %s17, 1
      %s215 = scalar_select %p214, %s17, 1
      %s216 = smul.addr %s215, 2
      %s217 = scalar_lea.vmem %s3, %s216
      %p218 = pneg %p106
      %p219 = pneg %p103
      %p220 = pneg %p132
      %p221 = pneg %p129
      %p222 = scmp.lt.s32.totalorder %s17, 1
      %s223 = scalar_select %p222, %s17, 1
      %s224 = smul.addr %s223, 4
      %s225 = scalar_lea.vmem %s4, %s224
      %p226 = pneg %p158
      %p227 = pneg %p155
      %p228 = scmp.lt.s32.totalorder %s17, 1
      %s229 = scalar_select %p228, %s17, 1
      %s230 = smul.addr %s229, 4
      %s231 = scalar_lea.vmem %s5, %s230
      %p232 = scmp.lt.s32.totalorder %s17, 1
      %s233 = scalar_select %p232, %s17, 1
      %s234 = smul.addr %s233, 2
      %s235 = scalar_lea.vmem %s2, %s234
      %p236 = scmp.lt.s32.totalorder %s17, 1
      %s237 = scalar_select %p236, %s17, 1
      %s238 = smul.addr %s237, 2
      %s239 = scalar_lea.vmem %s3, %s238
      %p240 = scmp.lt.s32.totalorder %s17, 1
      %s241 = scalar_select %p240, %s17, 1
      %s242 = smul.addr %s241, 4
      %s243 = scalar_lea.vmem %s4, %s242
      %p244 = scmp.lt.s32.totalorder %s17, 1
      %s245 = scalar_select %p244, %s17, 1
      %s246 = smul.addr %s245, 4
      %s247 = scalar_lea.vmem %s5, %s246
      %v248 = vld [vmem:[%s0] sm:$0x7]
      %v249 = vld [vmem:[%s235] sm:$0x3]
      %vm250 = vcmask 15360
      %v252 = vsel %vm250, %v248, 0
      %vm254 = vcmask 1041408
      %v256 = vsel %vm254, %v249, 0
      %258 = vmatprep.subr.mxu0 0.0
      %259 = vmatpush1.msra.mxu0 %v256
      %260 = vmatprep.subr.mxu0 0.0
      %261 = vmatpush1.msra.mxu0 0.0
      %262 = vmatprep.subr.mxu0 0.0
      %263 = vmatpush1.msra.mxu0 0.0
      %264 = vmatprep.subr.mxu0 0.0
      %265 = vmatpush1.msra.mxu0 0.0
      %266 = vmatprep.subr.mxu0 0.0
      %267 = vmatpush1.msra.mxu0 0.0
      %268 = vmatprep.subr.mxu0 0.0
      %269 = vmatpush1.msra.mxu0 0.0
      %270 = vmatprep.subr.mxu0 0.0
      %271 = vmatpush1.msra.mxu0 0.0
      %272 = vmatprep.subr.mxu0 0.0
      %273 = vmatpush1.msra.mxu0 0.0
      %274 = vmatprep.subr.mxu0 0.0
      %275 = vmatpush1.msra.mxu0 0.0
      %276 = vmatprep.subr.mxu0 0.0
      %277 = vmatpush1.msra.mxu0 0.0
      %278 = vmatprep.subr.mxu0 0.0
      %279 = vmatpush1.msra.mxu0 0.0
      %280 = vmatprep.subr.mxu0 0.0
      %281 = vmatpush1.msra.mxu0 0.0
      %282 = vmatprep.subr.mxu0 0.0
      %283 = vmatpush1.msra.mxu0 0.0
      %284 = vmatprep.subr.mxu0 0.0
      %285 = vmatpush1.msra.mxu0 0.0
      %286 = vmatprep.subr.mxu0 0.0
      %287 = vmatpush1.msra.mxu0 0.0
      %288 = vmatprep.subr.mxu0 0.0
      %289 = vmatpush1.msra.mxu0 0.0
      %290 = vmatprep.subr.mxu0 0.0
      %291 = vmatpush1.msra.mxu0 0.0
      %292 = vmatprep.subr.mxu0 0.0
      %293 = vmatpush1.msra.mxu0 0.0
      %294 = vmatprep.subr.mxu0 0.0
      %295 = vmatpush1.msra.mxu0 0.0
      %296 = vmatprep.subr.mxu0 0.0
      %297 = vmatpush1.msra.mxu0 0.0
      %298 = vmatprep.subr.mxu0 0.0
      %299 = vmatpush1.msra.mxu0 0.0
      %300 = vmatprep.subr.mxu0 0.0
      %301 = vmatpush1.msra.mxu0 0.0
      %302 = vmatprep.subr.mxu0 0.0
      %303 = vmatpush1.msra.mxu0 0.0
      %304 = vmatprep.subr.mxu0 0.0
      %305 = vmatpush1.msra.mxu0 0.0
      %306 = vmatprep.subr.mxu0 0.0
      %307 = vmatpush1.msra.mxu0 0.0
      %308 = vmatprep.subr.mxu0 0.0
      %309 = vmatpush1.msra.mxu0 0.0
      %310 = vmatprep.subr.mxu0 0.0
      %311 = vmatpush1.msra.mxu0 0.0
      %312 = vmatprep.subr.mxu0 0.0
      %313 = vmatpush1.msra.mxu0 0.0
      %314 = vmatprep.subr.mxu0 0.0
      %315 = vmatpush1.msra.mxu0 0.0
      %316 = vmatprep.subr.mxu0 0.0
      %317 = vmatpush1.msra.mxu0 0.0
      %318 = vmatprep.subr.mxu0 0.0
      %319 = vmatpush1.msra.mxu0 0.0
      %320 = vmatprep.subr.mxu0 0.0
      %321 = vmatpush1.msra.mxu0 0.0
      %322 = vmatprep.mubr.f32.mxu0 0.0
      %323 = vmatmul.mubr.f32.gmra.mrb[0].mxu0 %v252
      %v324 = vpop.f32.mrb[0].mxu0
      %v325 = vadd.f32 0.0, %v324
      %v326 = vpop.f32.mrb[0].mxu0
      %327 = vdwg.mxu0
      %v328 = vld [vmem:[%s1] sm:$0x7]
      %v329 = vld [vmem:[%s239] sm:$0x3]
      %v331 = vsel %vm250, %v328, 0
      %v334 = vsel %vm254, %v329, 0
      %336 = vmatprep.subr.mxu0 0.0
      %337 = vmatpush1.msra.mxu0 %v334
      %338 = vmatprep.subr.mxu0 0.0
      %339 = vmatpush1.msra.mxu0 0.0
      %340 = vmatprep.subr.mxu0 0.0
      %341 = vmatpush1.msra.mxu0 0.0
      %342 = vmatprep.subr.mxu0 0.0
      %343 = vmatpush1.msra.mxu0 0.0
      %344 = vmatprep.subr.mxu0 0.0
      %345 = vmatpush1.msra.mxu0 0.0
      %346 = vmatprep.subr.mxu0 0.0
      %347 = vmatpush1.msra.mxu0 0.0
      %348 = vmatprep.subr.mxu0 0.0
      %349 = vmatpush1.msra.mxu0 0.0
      %350 = vmatprep.subr.mxu0 0.0
      %351 = vmatpush1.msra.mxu0 0.0
      %352 = vmatprep.subr.mxu0 0.0
      %353 = vmatpush1.msra.mxu0 0.0
      %354 = vmatprep.subr.mxu0 0.0
      %355 = vmatpush1.msra.mxu0 0.0
      %356 = vmatprep.subr.mxu0 0.0
      %357 = vmatpush1.msra.mxu0 0.0
      %358 = vmatprep.subr.mxu0 0.0
      %359 = vmatpush1.msra.mxu0 0.0
      %360 = vmatprep.subr.mxu0 0.0
      %361 = vmatpush1.msra.mxu0 0.0
      %362 = vmatprep.subr.mxu0 0.0
      %363 = vmatpush1.msra.mxu0 0.0
      %364 = vmatprep.subr.mxu0 0.0
      %365 = vmatpush1.msra.mxu0 0.0
      %366 = vmatprep.subr.mxu0 0.0
      %367 = vmatpush1.msra.mxu0 0.0
      %368 = vmatprep.subr.mxu0 0.0
      %369 = vmatpush1.msra.mxu0 0.0
      %370 = vmatprep.subr.mxu0 0.0
      %371 = vmatpush1.msra.mxu0 0.0
      %372 = vmatprep.subr.mxu0 0.0
      %373 = vmatpush1.msra.mxu0 0.0
      %374 = vmatprep.subr.mxu0 0.0
      %375 = vmatpush1.msra.mxu0 0.0
      %376 = vmatprep.subr.mxu0 0.0
      %377 = vmatpush1.msra.mxu0 0.0
      %378 = vmatprep.subr.mxu0 0.0
      %379 = vmatpush1.msra.mxu0 0.0
      %380 = vmatprep.subr.mxu0 0.0
      %381 = vmatpush1.msra.mxu0 0.0
      %382 = vmatprep.subr.mxu0 0.0
      %383 = vmatpush1.msra.mxu0 0.0
      %384 = vmatprep.subr.mxu0 0.0
      %385 = vmatpush1.msra.mxu0 0.0
      %386 = vmatprep.subr.mxu0 0.0
      %387 = vmatpush1.msra.mxu0 0.0
      %388 = vmatprep.subr.mxu0 0.0
      %389 = vmatpush1.msra.mxu0 0.0
      %390 = vmatprep.subr.mxu0 0.0
      %391 = vmatpush1.msra.mxu0 0.0
      %392 = vmatprep.subr.mxu0 0.0
      %393 = vmatpush1.msra.mxu0 0.0
      %394 = vmatprep.subr.mxu0 0.0
      %395 = vmatpush1.msra.mxu0 0.0
      %396 = vmatprep.subr.mxu0 0.0
      %397 = vmatpush1.msra.mxu0 0.0
      %398 = vmatprep.subr.mxu0 0.0
      %399 = vmatpush1.msra.mxu0 0.0
      %400 = vmatprep.mubr.f32.mxu0 0.0
      %401 = vmatmul.mubr.f32.gmra.mrb[0].mxu0 %v331
      %v402 = vpop.f32.mrb[0].mxu0
      %v403 = vadd.f32 0.0, %v402
      %v404 = vpop.f32.mrb[0].mxu0
      %405 = vdwg.mxu0
      %vm406 = vcmask 10240
      %407 = vst.msk [vmem:[%s243] sm:$0x7] %vm406, %v325
      %408 = vst.msk [vmem:[%s247] sm:$0x7] %vm406, %v403
      %p409 = scmp.lt.s32.totalorder %s17, 1
      %s410 = scalar_select %p409, %s17, 1
      %s411 = smul.addr %s410, 4
      %s412 = scalar_lea.vmem %s4, %s411
      %p413 = scmp.lt.s32.totalorder %s17, 1
      %s414 = scalar_select %p413, %s17, 1
      %s415 = smul.addr %s414, 4
      %s416 = scalar_lea.vmem %s5, %s415
      // Predicated region
      $region37: #{tpu_custom_call.1} parent=35 // pred_check
        %p417 = pneg %p129
      $region38: #{tpu_custom_call.1} parent=35 // pred_check_branch
        %419 = sbr.rel (%p417) target = $region40
      $region39: #{tpu_custom_call.1} parent=35 // pred_region
        _
      $region40: #{tpu_custom_call.1} parent=35 // pred_fallthru
        _
      // Predicated region
      $region41: #{tpu_custom_call.1} parent=35 // pred_check
        %p420 = pneg %p155
      $region42: #{tpu_custom_call.1} parent=35 // pred_check_branch
        %422 = sbr.rel (%p420) target = $region44
      $region43: #{tpu_custom_call.1} parent=35 // pred_region
        _
      $region44: #{tpu_custom_call.1} parent=35 // pred_fallthru
        _
    $region36: #{tpu_custom_call.1} parent=5 // pred_fallthru
      _
    %p423 = scmp.le.s32.totalorder 2, %s12
    // Predicated region
    $region45: #{tpu_custom_call.1} parent=5 // pred_check
      %p424 = pneg %p423
    $region46: #{tpu_custom_call.1} parent=5 // pred_check_branch
      %426 = sbr.rel (%p424) target = $region48
    $region47: #{tpu_custom_call.1} parent=5 // pred_region
      %s427 = ssub.s32 %s12, 2
      // Predicated region
      $region49: #{tpu_custom_call.1} parent=47 // pred_check
        %p428 = pneg %p135
      $region50: #{tpu_custom_call.1} parent=47 // pred_check_branch
        %430 = sbr.rel (%p428) target = $region52
      $region51: #{tpu_custom_call.1} parent=47 // pred_region
        %p431 = scmp.lt.s32.totalorder %s18, 1
        %s432 = scalar_select %p431, %s18, 1
        %s433 = smul.addr %s432, 4
        %s434 = scalar_lea.vmem %s4, %s433
      $region52: #{tpu_custom_call.1} parent=47 // pred_fallthru
        _
      // Predicated region
      $region53: #{tpu_custom_call.1} parent=47 // pred_check
        %p435 = pneg %p161
      $region54: #{tpu_custom_call.1} parent=47 // pred_check_branch
        %437 = sbr.rel (%p435) target = $region56
      $region55: #{tpu_custom_call.1} parent=47 // pred_region
        %p438 = scmp.lt.s32.totalorder %s18, 1
        %s439 = scalar_select %p438, %s18, 1
        %s440 = smul.addr %s439, 4
        %s441 = scalar_lea.vmem %s5, %s440
      $region56: #{tpu_custom_call.1} parent=47 // pred_fallthru
        _
    $region48: #{tpu_custom_call.1} parent=5 // pred_fallthru
      _
  $region6: #{tpu_custom_call.1} parent=0 // loop_footer
    %s16 = sadd.s32 1, %s12
  $region7: #{tpu_custom_call.1} parent=0 // loop_footer_branch
    %11 = sbr.rel target = $region3
  $region8: #{tpu_custom_call.1} parent=0 // loop_exit
    _

</llo_original>
